<compile_context>
chip_gen: v7x
topology: tpu7x:2x2x1
jax: 0.10.0
libtpu: 0.0.40
codegen_flags: <defaults>
</compile_context>

<pallas_src>
import math

import jax
import jax.numpy as jnp
from jax import lax
from jax.experimental import pallas as pl
from jax.experimental.pallas import tpu as pltpu

# Small, self-consistent shapes (module defaults scaled down).
NUM_CLASSES = 16      # C
IN_CHANNEL = 32       # gc1 input feature dim, also feature-vector dim
HIDDEN = 64           # gc1 output / gc2 input (512 in the original)
OUT_CHANNEL = 16      # gc2 output (100 in the original); W maps to 2*OUT_CHANNEL
BATCH = 4
T_DATA = 10.0
LEAKY_SLOPE = 0.2
EPS = 1e-12

# Packed-weight-slab layout (compile-time constants).
#   rows [0, IN)        : [ W1 (IN x H) | W (IN x 2O) ]        width H + 2O
#   rows [IN, IN + O)   : W2^T (O x H), lane-padded to width H + 2O
W_SLAB_COLS = HIDDEN + 2 * OUT_CHANNEL          # 96
W_SLAB_ROWS = IN_CHANNEL + OUT_CHANNEL          # 48
W2T_ROW0 = IN_CHANNEL


def relationnet_kernel(a_ref, xf_ref, w_ref, out_ref):
    C, IN, H, O, B = NUM_CLASSES, IN_CHANNEL, HIDDEN, OUT_CHANNEL, BATCH
    f32 = jnp.float32

    # --- unpack the packed operands (static slices, no relayout) ---
    a_cols = a_ref[...]                                    # (C, 2C)  [A_data | A_know]
    xf = xf_ref[...]                                       # (C+B, IN) [inp ; feature]
    wcat = w_ref[0:IN, :]                                  # (IN, H+2O) = [W1 | W]
    w2t = w_ref[W2T_ROW0:W2T_ROW0 + O, 0:H]                # (O, H) = W2^T

    # --- normalized adjacencies, both branches at once (lane-stacked) ---
    lane = lax.broadcasted_iota(jnp.int32, (C, 2 * C), 1)
    thr = jnp.where(lane < C, f32(T_DATA), f32(0.0))       # per-branch threshold
    a_thr = jnp.where(a_cols < thr, f32(0.0), a_cols)      # (C, 2C)

    # Per-branch row sums (sublane vectors) and d = rowsum^-0.5 (EUP rsqrt).
    s_d = jnp.sum(a_thr[:, :C], axis=1, keepdims=True)     # (C, 1)
    s_k = jnp.sum(a_thr[:, C:], axis=1, keepdims=True)     # (C, 1)
    d_d = lax.rsqrt(jnp.maximum(s_d, f32(EPS)))
    d_k = lax.rsqrt(jnp.maximum(s_k, f32(EPS)))

    # M_b = diag(d_b) @ A_b (per branch), still lane-stacked: (C, 2C).
    # adj_b @ X == d_b * (A_b.T @ (d_b * X)) == d_b * dot_general(M_b, X, 0-0),
    # so the gen_adj transpose never materializes.
    row_scale = jnp.where(lane < C, d_d, d_k)              # (C, 2C)
    M = a_thr * row_scale
    d_stk = jnp.concatenate([d_d, d_k], axis=0)            # (2C, 1)

    dn_tn = (((0,), (0,)), ((), ()))                       # contract dim0-dim0 (lhs^T @ rhs)
    dn_nt = (((1,), (1,)), ((), ()))                       # contract last-last (lhs @ rhs^T)

    # --- gc1 support dot + feature projection in ONE MXU pass ---
    combined = jnp.dot(xf, wcat, preferred_element_type=f32)   # (C+B, H+2O)
    s1 = combined[0:C, 0:H]                                    # (C, H)  = inp @ W1
    fw = combined[C:C + B, H:H + 2 * O]                        # (B, 2O) = feature @ W

    # --- gc1 adjacency apply: ONE stacked TN dot, then LeakyReLU ---
    x1 = d_stk * lax.dot_general(M, s1, dn_tn, preferred_element_type=f32)   # (2C, H)
    x1 = jnp.where(x1 >= 0.0, x1, f32(LEAKY_SLOPE) * x1)

    # --- gc2: ONE stacked support dot (against W2^T) + two tiny TN dots ---
    s2 = lax.dot_general(x1, w2t, dn_nt, preferred_element_type=f32)         # (2C, O)
    y_d = d_d * lax.dot_general(M[:, :C], s2[:C], dn_tn,
                                preferred_element_type=f32)                  # (C, O) = adj_d @ s2_d
    y_k = d_k * lax.dot_general(M[:, C:], s2[C:], dn_tn,
                                preferred_element_type=f32)                  # (C, O) = adj_k @ s2_k

    # --- final einsum('bk,kd,dc->bc'): fw @ [y_d.T; y_k.T] without transposes ---
    out = (lax.dot_general(fw[:, :O], y_d, dn_nt, preferred_element_type=f32)
           + lax.dot_general(fw[:, O:], y_k, dn_nt, preferred_element_type=f32))
    out_ref[...] = out                                                       # (B, C)


def relation_net(a_data, a_know, inp, feature, w1, w2, w):
    """Pack the 7 logical operands into 3 DMA slabs and run the fused kernel."""
    # 1) adjacencies lane-stacked: (C, 2C)
    a_cols = jnp.concatenate([a_data, a_know], axis=1)
    # 2) inp + feature sublane-stacked: (C + B, IN)
    xf = jnp.concatenate([inp, feature], axis=0)
    # 3) weights packed into one lane-padded slab (in practice packed once):
    #    rows 0..IN = [W1 | W], rows IN..IN+O = W2^T padded to the slab width.
    wcat = jnp.concatenate([w1, w], axis=1)                            # (IN, H+2O)
    w2t = jnp.pad(w2.T, ((0, 0), (0, W_SLAB_COLS - HIDDEN)))           # (O, H+2O)
    w_slab = jnp.concatenate([wcat, w2t], axis=0)                      # (48, 96)

    vmem = pl.BlockSpec(memory_space=pltpu.MemorySpace.VMEM)
    return pl.pallas_call(
        relationnet_kernel,
        out_shape=jax.ShapeDtypeStruct((feature.shape[0], NUM_CLASSES),
                                       jnp.float32),
        in_specs=[vmem, vmem, vmem],
        out_specs=vmem,
    )(a_cols, xf, w_slab)


def _gen_adj_ref(A, t):
    """adj[i, j] = A[j, i] * d[i] * d[j], d = rowsum(A_thresholded)^-0.5."""
    A = jnp.where(A < t, 0.0, A)
    d = lax.rsqrt(jnp.maximum(jnp.sum(A, axis=1, keepdims=True), EPS))  # (C, 1)
    return A.T * d * d.T


def relation_net_ref(a_data, a_know, inp, feature, w1, w2, w):
    """Pure-JAX reference mirroring the PyTorch forward."""
    adj = jnp.stack([_gen_adj_ref(a_data, T_DATA), _gen_adj_ref(a_know, 0.0)],
                    axis=0)
    x = jnp.einsum('bij,jh->bih', adj, inp @ w1)              # (2, C, H)
    x = jnp.where(x >= 0.0, x, LEAKY_SLOPE * x)
    x = jnp.einsum('bij,bjo->bio', adj, x @ w2)               # (2, C, O)
    x = jnp.transpose(x, (0, 2, 1)).reshape(-1, NUM_CLASSES)  # (2*O, C)
    return jnp.einsum('bk,kd,dc->bc', feature, w, x)          # (B, C)


if __name__ == "__main__":
    key = jax.random.PRNGKey(0)
    k_ad, k_ak, k_inp, k_feat, k_w1, k_w2, k_w = jax.random.split(key, 7)

    # Adjacency matrices (A_data thresholded at 10; add 10*I so no row zeroes out).
    a_data = (jax.random.uniform(k_ad, (NUM_CLASSES, NUM_CLASSES),
                                 jnp.float32, 0.0, 20.0)
              + 10.0 * jnp.eye(NUM_CLASSES, dtype=jnp.float32))
    a_know = jax.random.uniform(k_ak, (NUM_CLASSES, NUM_CLASSES),
                                jnp.float32, 0.0, 1.0)

    # Inputs.
    inp = jax.random.normal(k_inp, (NUM_CLASSES, IN_CHANNEL), jnp.float32)
    feature = jax.random.normal(k_feat, (BATCH, IN_CHANNEL), jnp.float32)

    # Deterministic parameter init (matches the module's init schemes).
    stdv1 = 1.0 / math.sqrt(HIDDEN)
    w1 = jax.random.uniform(k_w1, (IN_CHANNEL, HIDDEN), jnp.float32,
                            -stdv1, stdv1)
    stdv2 = 1.0 / math.sqrt(OUT_CHANNEL)
    w2 = jax.random.uniform(k_w2, (HIDDEN, OUT_CHANNEL), jnp.float32,
                            -stdv2, stdv2)
    xav = math.sqrt(6.0 / (IN_CHANNEL + 2 * OUT_CHANNEL))
    w = jax.random.uniform(k_w, (IN_CHANNEL, 2 * OUT_CHANNEL), jnp.float32,
                           -xav, xav)

    out = relation_net(a_data, a_know, inp, feature, w1, w2, w)
    out = jax.block_until_ready(out)

    ref = relation_net_ref(a_data, a_know, inp, feature, w1, w2, w)
    assert out.shape == (BATCH, NUM_CLASSES)
    assert jnp.allclose(out, ref, rtol=1e-3, atol=1e-3)

    print("KERNEL_OK")
</pallas_src>

<mosaic_0001>
module attributes {stable_mosaic.version = 11 : i64} {
  func.func @relationnet_kernel(%arg0: memref<16x32xf32, #tpu.memory_space<vmem>>, %arg1: memref<20x32xf32, #tpu.memory_space<vmem>>, %arg2: memref<48x96xf32, #tpu.memory_space<vmem>>, %arg3: memref<4x16xf32, #tpu.memory_space<vmem>>) attributes {dimension_semantics = [], scalar_prefetch = 0 : i64, scratch_operands = 0 : i64, tpu.core_type = #tpu.core_type<tc>} {
    %c0 = arith.constant 0 : index
    %c0_0 = arith.constant 0 : index
    %0 = vector.load %arg0[%c0, %c0_0] : memref<16x32xf32, #tpu.memory_space<vmem>>, vector<16x32xf32>
    %c0_1 = arith.constant 0 : index
    %c0_2 = arith.constant 0 : index
    %1 = vector.load %arg1[%c0_1, %c0_2] : memref<20x32xf32, #tpu.memory_space<vmem>>, vector<20x32xf32>
    %c0_3 = arith.constant 0 : index
    %c0_4 = arith.constant 0 : index
    %2 = vector.load %arg2[%c0_3, %c0_4] : memref<48x96xf32, #tpu.memory_space<vmem>>, vector<32x96xf32>
    %c32 = arith.constant 32 : index
    %c0_5 = arith.constant 0 : index
    %3 = vector.load %arg2[%c32, %c0_5] : memref<48x96xf32, #tpu.memory_space<vmem>>, vector<16x64xf32>
    %4 = tpu.iota {dimensions = array<i32: 1>} : vector<16x32xi32>
    %c16_i32 = arith.constant 16 : i32
    %5 = vector.broadcast %c16_i32 : i32 to vector<16x32xi32>
    %6 = arith.cmpi slt, %4, %5 : vector<16x32xi32>
    %cst = arith.constant 1.000000e+01 : f32
    %cst_6 = arith.constant 0.000000e+00 : f32
    %7 = vector.broadcast %cst : f32 to vector<16x32xf32>
    %8 = vector.broadcast %cst_6 : f32 to vector<16x32xf32>
    %9 = arith.select %6, %7, %8 : vector<16x32xi1>, vector<16x32xf32>
    %10 = arith.cmpf olt, %0, %9 : vector<16x32xf32>
    %cst_7 = arith.constant 0.000000e+00 : f32
    %11 = vector.broadcast %cst_7 : f32 to vector<16x32xf32>
    %12 = arith.select %10, %11, %0 : vector<16x32xi1>, vector<16x32xf32>
    %13 = vector.extract_strided_slice %12 {offsets = [0, 0], sizes = [16, 16], strides = [1, 1]} : vector<16x32xf32> to vector<16x16xf32>
    %cst_8 = arith.constant dense<0.000000e+00> : vector<16xf32>
    %14 = vector.multi_reduction <add>, %13, %cst_8 [1] : vector<16x16xf32> to vector<16xf32>
    %15 = vector.shape_cast %14 : vector<16xf32> to vector<16x1xf32>
    %16 = vector.extract_strided_slice %12 {offsets = [0, 16], sizes = [16, 16], strides = [1, 1]} : vector<16x32xf32> to vector<16x16xf32>
    %cst_9 = arith.constant dense<0.000000e+00> : vector<16xf32>
    %17 = vector.multi_reduction <add>, %16, %cst_9 [1] : vector<16x16xf32> to vector<16xf32>
    %18 = vector.shape_cast %17 : vector<16xf32> to vector<16x1xf32>
    %cst_10 = arith.constant 9.99999996E-13 : f32
    %19 = vector.broadcast %cst_10 : f32 to vector<16x1xf32>
    %20 = arith.maximumf %15, %19 : vector<16x1xf32>
    %21 = math.rsqrt %20 : vector<16x1xf32>
    %cst_11 = arith.constant 9.99999996E-13 : f32
    %22 = vector.broadcast %cst_11 : f32 to vector<16x1xf32>
    %23 = arith.maximumf %18, %22 : vector<16x1xf32>
    %24 = math.rsqrt %23 : vector<16x1xf32>
    %c16_i32_12 = arith.constant 16 : i32
    %25 = vector.broadcast %c16_i32_12 : i32 to vector<16x32xi32>
    %26 = arith.cmpi slt, %4, %25 : vector<16x32xi32>
    %27 = vector.shape_cast %21 : vector<16x1xf32> to vector<16x1xf32>
    %28 = vector.broadcast %27 : vector<16x1xf32> to vector<16x32xf32>
    %29 = vector.shape_cast %24 : vector<16x1xf32> to vector<16x1xf32>
    %30 = vector.broadcast %29 : vector<16x1xf32> to vector<16x32xf32>
    %31 = arith.select %26, %28, %30 : vector<16x32xi1>, vector<16x32xf32>
    %32 = arith.mulf %12, %31 : vector<16x32xf32>
    %33 = tpu.concatenate %21, %24 in 0 : vector<16x1xf32>, vector<16x1xf32> -> vector<32x1xf32>
    %cst_13 = arith.constant dense<0.000000e+00> : vector<20x96xf32>
    %34 = tpu.matmul %1, %2, %cst_13 {dimension_numbers = #tpu.dot_dimension_numbers<[1], [0], [0], [1], [0, 0, 1, 1], [], []>} : vector<20x32xf32>, vector<32x96xf32>, vector<20x96xf32> -> vector<20x96xf32>
    %35 = vector.extract_strided_slice %34 {offsets = [0, 0], sizes = [16, 64], strides = [1, 1]} : vector<20x96xf32> to vector<16x64xf32>
    %36 = vector.extract_strided_slice %34 {offsets = [16, 64], sizes = [4, 32], strides = [1, 1]} : vector<20x96xf32> to vector<4x32xf32>
    %cst_14 = arith.constant dense<0.000000e+00> : vector<32x64xf32>
    %37 = tpu.matmul %32, %35, %cst_14 {dimension_numbers = #tpu.dot_dimension_numbers<[0], [0], [1], [1], [0, 1, 1, 1], [], []>} : vector<16x32xf32>, vector<16x64xf32>, vector<32x64xf32> -> vector<32x64xf32>
    %38 = vector.broadcast %33 : vector<32x1xf32> to vector<32x64xf32>
    %39 = arith.mulf %38, %37 : vector<32x64xf32>
    %cst_15 = arith.constant 0.000000e+00 : f32
    %40 = vector.broadcast %cst_15 : f32 to vector<32x64xf32>
    %41 = arith.cmpf oge, %39, %40 : vector<32x64xf32>
    %cst_16 = arith.constant 2.000000e-01 : f32
    %42 = vector.broadcast %cst_16 : f32 to vector<32x64xf32>
    %43 = arith.mulf %42, %39 : vector<32x64xf32>
    %44 = arith.select %41, %39, %43 : vector<32x64xi1>, vector<32x64xf32>
    %cst_17 = arith.constant dense<0.000000e+00> : vector<32x16xf32>
    %45 = tpu.matmul %44, %3, %cst_17 {dimension_numbers = #tpu.dot_dimension_numbers<[1], [1], [0], [0], [0, 0, 1, 0], [], []>} : vector<32x64xf32>, vector<16x64xf32>, vector<32x16xf32> -> vector<32x16xf32>
    %46 = vector.extract_strided_slice %32 {offsets = [0, 0], sizes = [16, 16], strides = [1, 1]} : vector<16x32xf32> to vector<16x16xf32>
    %47 = vector.extract_strided_slice %45 {offsets = [0, 0], sizes = [16, 16], strides = [1, 1]} : vector<32x16xf32> to vector<16x16xf32>
    %cst_18 = arith.constant dense<0.000000e+00> : vector<16x16xf32>
    %48 = tpu.matmul %46, %47, %cst_18 {dimension_numbers = #tpu.dot_dimension_numbers<[0], [0], [1], [1], [0, 1, 1, 1], [], []>} : vector<16x16xf32>, vector<16x16xf32>, vector<16x16xf32> -> vector<16x16xf32>
    %49 = vector.broadcast %21 : vector<16x1xf32> to vector<16x16xf32>
    %50 = arith.mulf %49, %48 : vector<16x16xf32>
    %51 = vector.extract_strided_slice %32 {offsets = [0, 16], sizes = [16, 16], strides = [1, 1]} : vector<16x32xf32> to vector<16x16xf32>
    %52 = vector.extract_strided_slice %45 {offsets = [16, 0], sizes = [16, 16], strides = [1, 1]} : vector<32x16xf32> to vector<16x16xf32>
    %cst_19 = arith.constant dense<0.000000e+00> : vector<16x16xf32>
    %53 = tpu.matmul %51, %52, %cst_19 {dimension_numbers = #tpu.dot_dimension_numbers<[0], [0], [1], [1], [0, 1, 1, 1], [], []>} : vector<16x16xf32>, vector<16x16xf32>, vector<16x16xf32> -> vector<16x16xf32>
    %54 = vector.broadcast %24 : vector<16x1xf32> to vector<16x16xf32>
    %55 = arith.mulf %54, %53 : vector<16x16xf32>
    %56 = vector.extract_strided_slice %36 {offsets = [0, 0], sizes = [4, 16], strides = [1, 1]} : vector<4x32xf32> to vector<4x16xf32>
    %cst_20 = arith.constant dense<0.000000e+00> : vector<4x16xf32>
    %57 = tpu.matmul %56, %50, %cst_20 {dimension_numbers = #tpu.dot_dimension_numbers<[1], [1], [0], [0], [0, 0, 1, 0], [], []>} : vector<4x16xf32>, vector<16x16xf32>, vector<4x16xf32> -> vector<4x16xf32>
    %58 = vector.extract_strided_slice %36 {offsets = [0, 16], sizes = [4, 16], strides = [1, 1]} : vector<4x32xf32> to vector<4x16xf32>
    %cst_21 = arith.constant dense<0.000000e+00> : vector<4x16xf32>
    %59 = tpu.matmul %58, %55, %cst_21 {dimension_numbers = #tpu.dot_dimension_numbers<[1], [1], [0], [0], [0, 0, 1, 0], [], []>} : vector<4x16xf32>, vector<16x16xf32>, vector<4x16xf32> -> vector<4x16xf32>
    %60 = arith.addf %57, %59 : vector<4x16xf32>
    %c0_22 = arith.constant 0 : index
    %c0_23 = arith.constant 0 : index
    %61 = vector.load %arg3[%c0_22, %c0_23] : memref<4x16xf32, #tpu.memory_space<vmem>>, vector<4x16xf32>
    tpu.vector_store %arg3[%c0_22, %c0_23], %60 {strides = array<i32>} : memref<4x16xf32, #tpu.memory_space<vmem>>, vector<4x16xf32>,
    return
  }
}

</mosaic_0001>

<llo_original>
// kernel: tpu_custom_call.1
$region0: #{tpu_custom_call.1}
  #allocation0 [shape = 'u32[]', space=smem, size = 0x4, offset = 0x4, fixed_abs, tag = 'smem constant byte address 0x4 - core index']
  #allocation1 [shape = 'u32[144,128]{1,0:T(1,128)}', space=vmem, size = 0x12000, scoped, tag = 'internal scratch']
  %s0 = inlined_call_operand.hbm [shape: f32[16,32], index: 0, kind: input, shape index: {}]
  %s1 = inlined_call_operand.hbm [shape: f32[20,32], index: 1, kind: input, shape index: {}]
  %s2 = inlined_call_operand.hbm [shape: f32[48,96], index: 2, kind: input, shape index: {}]
  %s3 = inlined_call_operand.hbm [shape: f32[4,16], index: 3, kind: output, shape index: {}]
  %s4 = sld [smem:[#allocation0]]
  $region34: #{tpu_custom_call.1} parent=0
    _
  %s6 = ssub.s32 1, %s4
  %s7 = scalar_select 0, %s6, %s4
  $region1: #{tpu_custom_call.1} parent=0
    #allocation2 [shape = 'u8[8192]{0}', space=vmem, size = 0x2000, scoped, tag = 'input window, operand 0, single buffered']
    #allocation3 [shape = 's32[1]{0}', space=sflag, size = 0x4, scoped, tag = 'scoped memory for tpu_custom_call.1']
    #allocation4 [shape = 's32[1]{0}', space=sflag, size = 0x4, scoped, tag = 'scoped memory for tpu_custom_call.1']
    #allocation5 [shape = 'u8[12288]{0}', space=vmem, size = 0x3000, scoped, tag = 'input window, operand 1, single buffered']
    #allocation6 [shape = 's32[1]{0}', space=sflag, size = 0x4, scoped, tag = 'scoped memory for tpu_custom_call.1']
    #allocation7 [shape = 'u8[24576]{0}', space=vmem, size = 0x6000, scoped, tag = 'input window, operand 2, single buffered']
    #allocation8 [shape = 'u8[2048]{0}', space=vmem, size = 0x800, scoped, tag = 'output window, operand 0, single buffered']
    %8 = vsyncpa [#allocation3], 0
    %9 = vsyncpa [#allocation6], 0
    %10 = vsyncpa [#allocation4], 0
    // Predicated region
    $region2: #{tpu_custom_call.1} parent=1 // pred_check
      _
    $region3: #{tpu_custom_call.1} parent=1 // pred_check_branch
      %12 = sbr.rel (0) target = $region5
    $region4: #{tpu_custom_call.1} parent=1 // pred_region
      %s14 = ssub.s32 256, 256
      %15 = vsyncadd [#allocation3], %s14
      %s16 = sshll.u32 [#allocation2], 4
      %s17 = int_to_ptr.vmem [resolvable:$true] %s16
      %22 = dma.hbm_to_vmem [thread:$0]  %s0, 256, %s17, [#allocation3], 128, 128, 8
    $region5: #{tpu_custom_call.1} parent=1 // pred_fallthru
      _
    // Predicated region
    $region6: #{tpu_custom_call.1} parent=1 // pred_check
      _
    $region7: #{tpu_custom_call.1} parent=1 // pred_check_branch
      %24 = sbr.rel (0) target = $region9
    $region8: #{tpu_custom_call.1} parent=1 // pred_region
      %s26 = ssub.s32 384, 384
      %27 = vsyncadd [#allocation6], %s26
      %s28 = sshll.u32 [#allocation5], 4
      %s29 = int_to_ptr.vmem [resolvable:$true] %s28
      %34 = dma.hbm_to_vmem [thread:$0]  %s1, 384, %s29, [#allocation6], 128, 128, 8
    $region9: #{tpu_custom_call.1} parent=1 // pred_fallthru
      _
    // Predicated region
    $region10: #{tpu_custom_call.1} parent=1 // pred_check
      _
    $region11: #{tpu_custom_call.1} parent=1 // pred_check_branch
      %36 = sbr.rel (0) target = $region13
    $region12: #{tpu_custom_call.1} parent=1 // pred_region
      %s38 = ssub.s32 768, 768
      %39 = vsyncadd [#allocation6], %s38
      %s40 = sshll.u32 [#allocation7], 4
      %s41 = int_to_ptr.vmem [resolvable:$true] %s40
      %46 = dma.hbm_to_vmem [thread:$0]  %s2, 768, %s41, [#allocation6], 128, 128, 8
    $region13: #{tpu_custom_call.1} parent=1 // pred_fallthru
      _
    // Predicated region
    $region14: #{tpu_custom_call.1} parent=1 // pred_check
      _
    $region15: #{tpu_custom_call.1} parent=1 // pred_check_branch
      %48 = sbr.rel (0) target = $region17
    $region16: #{tpu_custom_call.1} parent=1 // pred_region
      %49 = dma.done [#allocation3], 256
    $region17: #{tpu_custom_call.1} parent=1 // pred_fallthru
      _
    // Predicated region
    $region18: #{tpu_custom_call.1} parent=1 // pred_check
      _
    $region19: #{tpu_custom_call.1} parent=1 // pred_check_branch
      %51 = sbr.rel (0) target = $region21
    $region20: #{tpu_custom_call.1} parent=1 // pred_region
      %52 = dma.done [#allocation6], 384
    $region21: #{tpu_custom_call.1} parent=1 // pred_fallthru
      _
    // Predicated region
    $region22: #{tpu_custom_call.1} parent=1 // pred_check
      _
    $region23: #{tpu_custom_call.1} parent=1 // pred_check_branch
      %54 = sbr.rel (0) target = $region25
    $region24: #{tpu_custom_call.1} parent=1 // pred_region
      %55 = dma.done [#allocation6], 768
    $region25: #{tpu_custom_call.1} parent=1 // pred_fallthru
      _
    %v56 = vld [vmem:[#allocation2] sm:$0xff]
    %v57 = vld [vmem:[#allocation2 + $0x8] sm:$0xff]
    %v58 = vld [vmem:[#allocation5] sm:$0xff]
    %v59 = vld [vmem:[#allocation5 + $0x8] sm:$0xff]
    %v60 = vld [vmem:[#allocation5 + $0x10] sm:$0xf]
    %v61 = vld [vmem:[#allocation7] sm:$0xff]
    %v62 = vld [vmem:[#allocation7 + $0x8] sm:$0xff]
    %v63 = vld [vmem:[#allocation7 + $0x10] sm:$0xff]
    %v64 = vld [vmem:[#allocation7 + $0x18] sm:$0xff]
    %v65 = vld [vmem:[#allocation7 + $0x20] sm:$0xff]
    %v66 = vld [vmem:[#allocation7 + $0x28] sm:$0xff]
    %v67 = vlaneseq
    %v68 = vand.u32 %v67, 127
    %vm69 = vcmp.lt.s32.totalorder %v68, 16
    %v70 = vsel %vm69, 10.0, 0.0
    %vm71 = vcmp.lt.f32.partialorder %v56, %v70
    %vm72 = vcmp.lt.f32.partialorder %v57, %v70
    %v73 = vsel %vm71, 0.0, %v56
    %v74 = vsel %vm72, 0.0, %v57
    %vm75 = vcmask 130048
    %v76 = vsel %vm75, %v73, 0.0
    %77 = vadd.xlane.f32.xlu0 %v76
    %v78 = vpop.xlane.xlu0 %77
    %v79 = vsel %vm75, %v74, 0.0
    %80 = vadd.xlane.f32.xlu0 %v79
    %v81 = vpop.xlane.xlu0 %80
    %84 = vrot.lane.b32.xlu0 %v73, 112
    %v85 = vpop.permute.xlu0 %84
    %86 = vrot.lane.b32.xlu0 %v74, 112
    %v87 = vpop.permute.xlu0 %86
    %v90 = vsel %vm75, %v85, 0.0
    %91 = vadd.xlane.f32.xlu0 %v90
    %v92 = vpop.xlane.xlu0 %91
    %v93 = vsel %vm75, %v87, 0.0
    %94 = vadd.xlane.f32.xlu0 %v93
    %v95 = vpop.xlane.xlu0 %94
    %v96 = vmax.f32 %v78, 1e-12
    %v97 = vmax.f32 %v81, 1e-12
    %v98 = vrsqrt.pop %v96
    %v99 = vrsqrt.pop %v97
    %v100 = vmax.f32 %v92, 1e-12
    %v101 = vmax.f32 %v95, 1e-12
    %v102 = vrsqrt.pop %v100
    %v103 = vrsqrt.pop %v101
    %v104 = vsel %vm69, %v98, %v102
    %v105 = vsel %vm69, %v99, %v103
    %v106 = vmul.f32 %v73, %v104
    %v107 = vmul.f32 %v74, %v105
    %vm108 = vcmask 261120
    %v110 = vsel %vm108, %v58, 0
    %v113 = vsel %vm108, %v59, 0
    %v116 = vsel %vm108, %v60, 0
    %118 = vmatprep.subr.mxu0 0.0
    %119 = vmatpush1.msra.mxu0 %v61
    %120 = vmatprep.subr.mxu0 0.0
    %121 = vmatpush1.msra.mxu0 %v62
    %122 = vmatprep.subr.mxu0 0.0
    %123 = vmatpush1.msra.mxu0 %v63
    %124 = vmatprep.subr.mxu0 0.0
    %125 = vmatpush1.msra.mxu0 %v64
    %126 = vmatprep.subr.mxu0 0.0
    %127 = vmatpush1.msra.mxu0 0.0
    %128 = vmatprep.subr.mxu0 0.0
    %129 = vmatpush1.msra.mxu0 0.0
    %130 = vmatprep.subr.mxu0 0.0
    %131 = vmatpush1.msra.mxu0 0.0
    %132 = vmatprep.subr.mxu0 0.0
    %133 = vmatpush1.msra.mxu0 0.0
    %134 = vmatprep.subr.mxu0 0.0
    %135 = vmatpush1.msra.mxu0 0.0
    %136 = vmatprep.subr.mxu0 0.0
    %137 = vmatpush1.msra.mxu0 0.0
    %138 = vmatprep.subr.mxu0 0.0
    %139 = vmatpush1.msra.mxu0 0.0
    %140 = vmatprep.subr.mxu0 0.0
    %141 = vmatpush1.msra.mxu0 0.0
    %142 = vmatprep.subr.mxu0 0.0
    %143 = vmatpush1.msra.mxu0 0.0
    %144 = vmatprep.subr.mxu0 0.0
    %145 = vmatpush1.msra.mxu0 0.0
    %146 = vmatprep.subr.mxu0 0.0
    %147 = vmatpush1.msra.mxu0 0.0
    %148 = vmatprep.subr.mxu0 0.0
    %149 = vmatpush1.msra.mxu0 0.0
    %150 = vmatprep.subr.mxu0 0.0
    %151 = vmatpush1.msra.mxu0 0.0
    %152 = vmatprep.subr.mxu0 0.0
    %153 = vmatpush1.msra.mxu0 0.0
    %154 = vmatprep.subr.mxu0 0.0
    %155 = vmatpush1.msra.mxu0 0.0
    %156 = vmatprep.subr.mxu0 0.0
    %157 = vmatpush1.msra.mxu0 0.0
    %158 = vmatprep.subr.mxu0 0.0
    %159 = vmatpush1.msra.mxu0 0.0
    %160 = vmatprep.subr.mxu0 0.0
    %161 = vmatpush1.msra.mxu0 0.0
    %162 = vmatprep.subr.mxu0 0.0
    %163 = vmatpush1.msra.mxu0 0.0
    %164 = vmatprep.subr.mxu0 0.0
    %165 = vmatpush1.msra.mxu0 0.0
    %166 = vmatprep.subr.mxu0 0.0
    %167 = vmatpush1.msra.mxu0 0.0
    %168 = vmatprep.subr.mxu0 0.0
    %169 = vmatpush1.msra.mxu0 0.0
    %170 = vmatprep.subr.mxu0 0.0
    %171 = vmatpush1.msra.mxu0 0.0
    %172 = vmatprep.subr.mxu0 0.0
    %173 = vmatpush1.msra.mxu0 0.0
    %174 = vmatprep.subr.mxu0 0.0
    %175 = vmatpush1.msra.mxu0 0.0
    %176 = vmatprep.subr.mxu0 0.0
    %177 = vmatpush1.msra.mxu0 0.0
    %178 = vmatprep.subr.mxu0 0.0
    %179 = vmatpush1.msra.mxu0 0.0
    %180 = vmatprep.subr.mxu0 0.0
    %181 = vmatpush1.msra.mxu0 0.0
    %182 = vmatprep.mubr.f32.mxu0 0.0
    %183 = vmatmul.mubr.f32.gmra.mrb[0].mxu0 %v110
    %v184 = vpop.f32.mrb[0].mxu0
    %v185 = vadd.f32 0.0, %v184
    %v186 = vpop.f32.mrb[0].mxu0
    %187 = vmatprep.mubr.f32.mxu0 0.0
    %188 = vmatmul.mubr.f32.gmra.mrb[0].mxu0 %v113
    %v189 = vpop.f32.mrb[0].mxu0
    %v190 = vadd.f32 0.0, %v189
    %v191 = vpop.f32.mrb[0].mxu0
    %192 = vmatprep.mubr.f32.mxu0 0.0
    %193 = vmatmul.mubr.f32.gmra.mrb[0].mxu0 %v116
    %v194 = vpop.f32.mrb[0].mxu0
    %v195 = vadd.f32 0.0, %v194
    %v196 = vpop.f32.mrb[0].mxu0
    %197 = vdwg.mxu0
    %198 = vxpose.xlu0.b32.start [1/16] %v106, 128
    %199 = vxpose.xlu0.b32.cont [2/16] %v107, 128
    %200 = vxpose.xlu0.b32.cont [3/16] 0.0, 128
    %201 = vxpose.xlu0.b32.cont [4/16] 0.0, 128
    %202 = vxpose.xlu0.b32.cont [5/16] 0.0, 128
    %203 = vxpose.xlu0.b32.cont [6/16] 0.0, 128
    %204 = vxpose.xlu0.b32.cont [7/16] 0.0, 128
    %205 = vxpose.xlu0.b32.cont [8/16] 0.0, 128
    %206 = vxpose.xlu0.b32.cont [9/16] 0.0, 128
    %207 = vxpose.xlu0.b32.cont [10/16] 0.0, 128
    %208 = vxpose.xlu0.b32.cont [11/16] 0.0, 128
    %209 = vxpose.xlu0.b32.cont [12/16] 0.0, 128
    %210 = vxpose.xlu0.b32.cont [13/16] 0.0, 128
    %211 = vxpose.xlu0.b32.cont [14/16] 0.0, 128
    %212 = vxpose.xlu0.b32.cont [15/16] 0.0, 128
    %213 = vxpose.xlu0.b32.end [16/16] 0.0, 128
    %v214 = vpop.trf.xlu0
    %v215 = vpop.trf.xlu0
    %v216 = vpop.trf.xlu0
    %v217 = vpop.trf.xlu0
    %v218 = vpop.trf.xlu0
    %v219 = vpop.trf.xlu0
    %v220 = vpop.trf.xlu0
    %v221 = vpop.trf.xlu0
    %v222 = vpop.trf.xlu0
    %v223 = vpop.trf.xlu0
    %v224 = vpop.trf.xlu0
    %v225 = vpop.trf.xlu0
    %v226 = vpop.trf.xlu0
    %v227 = vpop.trf.xlu0
    %v228 = vpop.trf.xlu0
    %v229 = vpop.trf.xlu0
    %v231 = vsel %vm75, %v214, 0
    %v234 = vsel %vm75, %v215, 0
    %v237 = vsel %vm75, %v216, 0
    %v240 = vsel %vm75, %v217, 0
    %242 = vmatprep.subr.mxu0 0.0
    %243 = vmatpush1.msra.mxu0 %v185
    %244 = vmatprep.subr.mxu0 0.0
    %245 = vmatpush1.msra.mxu0 %v190
    %246 = vmatprep.subr.mxu0 0.0
    %247 = vmatpush1.msra.mxu0 0.0
    %248 = vmatprep.subr.mxu0 0.0
    %249 = vmatpush1.msra.mxu0 0.0
    %250 = vmatprep.subr.mxu0 0.0
    %251 = vmatpush1.msra.mxu0 0.0
    %252 = vmatprep.subr.mxu0 0.0
    %253 = vmatpush1.msra.mxu0 0.0
    %254 = vmatprep.subr.mxu0 0.0
    %255 = vmatpush1.msra.mxu0 0.0
    %256 = vmatprep.subr.mxu0 0.0
    %257 = vmatpush1.msra.mxu0 0.0
    %258 = vmatprep.subr.mxu0 0.0
    %259 = vmatpush1.msra.mxu0 0.0
    %260 = vmatprep.subr.mxu0 0.0
    %261 = vmatpush1.msra.mxu0 0.0
    %262 = vmatprep.subr.mxu0 0.0
    %263 = vmatpush1.msra.mxu0 0.0
    %264 = vmatprep.subr.mxu0 0.0
    %265 = vmatpush1.msra.mxu0 0.0
    %266 = vmatprep.subr.mxu0 0.0
    %267 = vmatpush1.msra.mxu0 0.0
    %268 = vmatprep.subr.mxu0 0.0
    %269 = vmatpush1.msra.mxu0 0.0
    %270 = vmatprep.subr.mxu0 0.0
    %271 = vmatpush1.msra.mxu0 0.0
    %272 = vmatprep.subr.mxu0 0.0
    %273 = vmatpush1.msra.mxu0 0.0
    %274 = vmatprep.subr.mxu0 0.0
    %275 = vmatpush1.msra.mxu0 0.0
    %276 = vmatprep.subr.mxu0 0.0
    %277 = vmatpush1.msra.mxu0 0.0
    %278 = vmatprep.subr.mxu0 0.0
    %279 = vmatpush1.msra.mxu0 0.0
    %280 = vmatprep.subr.mxu0 0.0
    %281 = vmatpush1.msra.mxu0 0.0
    %282 = vmatprep.subr.mxu0 0.0
    %283 = vmatpush1.msra.mxu0 0.0
    %284 = vmatprep.subr.mxu0 0.0
    %285 = vmatpush1.msra.mxu0 0.0
    %286 = vmatprep.subr.mxu0 0.0
    %287 = vmatpush1.msra.mxu0 0.0
    %288 = vmatprep.subr.mxu0 0.0
    %289 = vmatpush1.msra.mxu0 0.0
    %290 = vmatprep.subr.mxu0 0.0
    %291 = vmatpush1.msra.mxu0 0.0
    %292 = vmatprep.subr.mxu0 0.0
    %293 = vmatpush1.msra.mxu0 0.0
    %294 = vmatprep.subr.mxu0 0.0
    %295 = vmatpush1.msra.mxu0 0.0
    %296 = vmatprep.subr.mxu0 0.0
    %297 = vmatpush1.msra.mxu0 0.0
    %298 = vmatprep.subr.mxu0 0.0
    %299 = vmatpush1.msra.mxu0 0.0
    %300 = vmatprep.subr.mxu0 0.0
    %301 = vmatpush1.msra.mxu0 0.0
    %302 = vmatprep.subr.mxu0 0.0
    %303 = vmatpush1.msra.mxu0 0.0
    %304 = vmatprep.subr.mxu0 0.0
    %305 = vmatpush1.msra.mxu0 0.0
    %306 = vmatprep.mubr.f32.mxu0 0.0
    %307 = vmatmul.mubr.f32.gmra.mrb[0].mxu0 %v231
    %v308 = vpop.f32.mrb[0].mxu0
    %v309 = vadd.f32 0.0, %v308
    %v310 = vpop.f32.mrb[0].mxu0
    %311 = vmatprep.mubr.f32.mxu0 0.0
    %312 = vmatmul.mubr.f32.gmra.mrb[0].mxu0 %v234
    %v313 = vpop.f32.mrb[0].mxu0
    %v314 = vadd.f32 0.0, %v313
    %v315 = vpop.f32.mrb[0].mxu0
    %316 = vmatprep.mubr.f32.mxu0 0.0
    %317 = vmatmul.mubr.f32.gmra.mrb[0].mxu0 %v237
    %v318 = vpop.f32.mrb[0].mxu0
    %v319 = vadd.f32 0.0, %v318
    %v320 = vpop.f32.mrb[0].mxu0
    %321 = vmatprep.mubr.f32.mxu0 0.0
    %322 = vmatmul.mubr.f32.gmra.mrb[0].mxu0 %v240
    %v323 = vpop.f32.mrb[0].mxu0
    %v324 = vadd.f32 0.0, %v323
    %v325 = vpop.f32.mrb[0].mxu0
    %326 = vdwg.mxu0
    %328 = vset.pattern.permute.xlu0 0
    %329 = vperm.xlu0 %328, %v98
    %v330 = vpop.permute.xlu0 %329
    %333 = vset.pattern.permute.xlu0 0
    %334 = vperm.xlu0 %333, %v99
    %v335 = vpop.permute.xlu0 %334
    %338 = vset.pattern.permute.xlu0 0
    %339 = vperm.xlu0 %338, %v102
    %v340 = vpop.permute.xlu0 %339
    %343 = vset.pattern.permute.xlu0 0
    %344 = vperm.xlu0 %343, %v103
    %v345 = vpop.permute.xlu0 %344
    %v347 = vmul.f32 %v330, %v309
    %v348 = vmul.f32 %v335, %v314
    %v349 = vmul.f32 %v340, %v319
    %v350 = vmul.f32 %v345, %v324
    %vm351 = vcmp.ge.f32.partialorder %v347, 0.0
    %vm352 = vcmp.ge.f32.partialorder %v348, 0.0
    %vm353 = vcmp.ge.f32.partialorder %v349, 0.0
    %vm354 = vcmp.ge.f32.partialorder %v350, 0.0
    %v355 = vmul.f32 %v347, 0.2
    %v356 = vmul.f32 %v348, 0.2
    %v357 = vmul.f32 %v349, 0.2
    %v358 = vmul.f32 %v350, 0.2
    %v359 = vsel %vm351, %v347, %v355
    %v360 = vsel %vm352, %v348, %v356
    %v361 = vsel %vm353, %v349, %v357
    %v362 = vsel %vm354, %v350, %v358
    %vm363 = vcmask 523264
    %v365 = vsel %vm363, %v359, 0
    %v368 = vsel %vm363, %v360, 0
    %v371 = vsel %vm363, %v361, 0
    %v374 = vsel %vm363, %v362, 0
    %v377 = vsel %vm363, %v65, 0
    %v380 = vsel %vm363, %v66, 0
    %382 = vmatprep.subr.mxu0 0.0
    %383 = vmatpush1.xpose.msra.mxu0 %v377
    %384 = vmatprep.subr.mxu0 0.0
    %385 = vmatpush1.xpose.msra.mxu0 %v380
    %386 = vmatprep.subr.mxu0 0.0
    %387 = vmatpush1.xpose.msra.mxu0 0.0
    %388 = vmatprep.subr.mxu0 0.0
    %389 = vmatpush1.xpose.msra.mxu0 0.0
    %390 = vmatprep.subr.mxu0 0.0
    %391 = vmatpush1.xpose.msra.mxu0 0.0
    %392 = vmatprep.subr.mxu0 0.0
    %393 = vmatpush1.xpose.msra.mxu0 0.0
    %394 = vmatprep.subr.mxu0 0.0
    %395 = vmatpush1.xpose.msra.mxu0 0.0
    %396 = vmatprep.subr.mxu0 0.0
    %397 = vmatpush1.xpose.msra.mxu0 0.0
    %398 = vmatprep.subr.mxu0 0.0
    %399 = vmatpush1.xpose.msra.mxu0 0.0
    %400 = vmatprep.subr.mxu0 0.0
    %401 = vmatpush1.xpose.msra.mxu0 0.0
    %402 = vmatprep.subr.mxu0 0.0
    %403 = vmatpush1.xpose.msra.mxu0 0.0
    %404 = vmatprep.subr.mxu0 0.0
    %405 = vmatpush1.xpose.msra.mxu0 0.0
    %406 = vmatprep.subr.mxu0 0.0
    %407 = vmatpush1.xpose.msra.mxu0 0.0
    %408 = vmatprep.subr.mxu0 0.0
    %409 = vmatpush1.xpose.msra.mxu0 0.0
    %410 = vmatprep.subr.mxu0 0.0
    %411 = vmatpush1.xpose.msra.mxu0 0.0
    %412 = vmatprep.subr.mxu0 0.0
    %413 = vmatpush1.xpose.msra.mxu0 0.0
    %414 = vmatprep.subr.mxu0 0.0
    %415 = vmatpush1.xpose.msra.mxu0 0.0
    %416 = vmatprep.subr.mxu0 0.0
    %417 = vmatpush1.xpose.msra.mxu0 0.0
    %418 = vmatprep.subr.mxu0 0.0
    %419 = vmatpush1.xpose.msra.mxu0 0.0
    %420 = vmatprep.subr.mxu0 0.0
    %421 = vmatpush1.xpose.msra.mxu0 0.0
    %422 = vmatprep.subr.mxu0 0.0
    %423 = vmatpush1.xpose.msra.mxu0 0.0
    %424 = vmatprep.subr.mxu0 0.0
    %425 = vmatpush1.xpose.msra.mxu0 0.0
    %426 = vmatprep.subr.mxu0 0.0
    %427 = vmatpush1.xpose.msra.mxu0 0.0
    %428 = vmatprep.subr.mxu0 0.0
    %429 = vmatpush1.xpose.msra.mxu0 0.0
    %430 = vmatprep.subr.mxu0 0.0
    %431 = vmatpush1.xpose.msra.mxu0 0.0
    %432 = vmatprep.subr.mxu0 0.0
    %433 = vmatpush1.xpose.msra.mxu0 0.0
    %434 = vmatprep.subr.mxu0 0.0
    %435 = vmatpush1.xpose.msra.mxu0 0.0
    %436 = vmatprep.subr.mxu0 0.0
    %437 = vmatpush1.xpose.msra.mxu0 0.0
    %438 = vmatprep.subr.mxu0 0.0
    %439 = vmatpush1.xpose.msra.mxu0 0.0
    %440 = vmatprep.subr.mxu0 0.0
    %441 = vmatpush1.xpose.msra.mxu0 0.0
    %442 = vmatprep.subr.mxu0 0.0
    %443 = vmatpush1.xpose.msra.mxu0 0.0
    %444 = vmatprep.subr.mxu0 0.0
    %445 = vmatpush1.xpose.msra.mxu0 0.0
    %446 = vmatprep.mubr.f32.mxu0 0.0
    %447 = vmatmul.mubr.f32.gmra.mrb[0].mxu0 %v365
    %v448 = vpop.f32.mrb[0].mxu0
    %v449 = vadd.f32 0.0, %v448
    %v450 = vpop.f32.mrb[0].mxu0
    %451 = vmatprep.mubr.f32.mxu0 0.0
    %452 = vmatmul.mubr.f32.gmra.mrb[0].mxu0 %v368
    %v453 = vpop.f32.mrb[0].mxu0
    %v454 = vadd.f32 0.0, %v453
    %v455 = vpop.f32.mrb[0].mxu0
    %456 = vmatprep.mubr.f32.mxu0 0.0
    %457 = vmatmul.mubr.f32.gmra.mrb[0].mxu0 %v371
    %v458 = vpop.f32.mrb[0].mxu0
    %v459 = vadd.f32 0.0, %v458
    %v460 = vpop.f32.mrb[0].mxu0
    %461 = vmatprep.mubr.f32.mxu0 0.0
    %462 = vmatmul.mubr.f32.gmra.mrb[0].mxu0 %v374
    %v463 = vpop.f32.mrb[0].mxu0
    %v464 = vadd.f32 0.0, %v463
    %v465 = vpop.f32.mrb[0].mxu0
    %466 = vdwg.mxu0
    %467 = vmatprep.subr.mxu0 0.0
    %468 = vmatpush1.msra.mxu0 %v449
    %469 = vmatprep.subr.mxu0 0.0
    %470 = vmatpush1.msra.mxu0 %v454
    %471 = vmatprep.subr.mxu0 0.0
    %472 = vmatpush1.msra.mxu0 0.0
    %473 = vmatprep.subr.mxu0 0.0
    %474 = vmatpush1.msra.mxu0 0.0
    %475 = vmatprep.subr.mxu0 0.0
    %476 = vmatpush1.msra.mxu0 0.0
    %477 = vmatprep.subr.mxu0 0.0
    %478 = vmatpush1.msra.mxu0 0.0
    %479 = vmatprep.subr.mxu0 0.0
    %480 = vmatpush1.msra.mxu0 0.0
    %481 = vmatprep.subr.mxu0 0.0
    %482 = vmatpush1.msra.mxu0 0.0
    %483 = vmatprep.subr.mxu0 0.0
    %484 = vmatpush1.msra.mxu0 0.0
    %485 = vmatprep.subr.mxu0 0.0
    %486 = vmatpush1.msra.mxu0 0.0
    %487 = vmatprep.subr.mxu0 0.0
    %488 = vmatpush1.msra.mxu0 0.0
    %489 = vmatprep.subr.mxu0 0.0
    %490 = vmatpush1.msra.mxu0 0.0
    %491 = vmatprep.subr.mxu0 0.0
    %492 = vmatpush1.msra.mxu0 0.0
    %493 = vmatprep.subr.mxu0 0.0
    %494 = vmatpush1.msra.mxu0 0.0
    %495 = vmatprep.subr.mxu0 0.0
    %496 = vmatpush1.msra.mxu0 0.0
    %497 = vmatprep.subr.mxu0 0.0
    %498 = vmatpush1.msra.mxu0 0.0
    %499 = vmatprep.subr.mxu0 0.0
    %500 = vmatpush1.msra.mxu0 0.0
    %501 = vmatprep.subr.mxu0 0.0
    %502 = vmatpush1.msra.mxu0 0.0
    %503 = vmatprep.subr.mxu0 0.0
    %504 = vmatpush1.msra.mxu0 0.0
    %505 = vmatprep.subr.mxu0 0.0
    %506 = vmatpush1.msra.mxu0 0.0
    %507 = vmatprep.subr.mxu0 0.0
    %508 = vmatpush1.msra.mxu0 0.0
    %509 = vmatprep.subr.mxu0 0.0
    %510 = vmatpush1.msra.mxu0 0.0
    %511 = vmatprep.subr.mxu0 0.0
    %512 = vmatpush1.msra.mxu0 0.0
    %513 = vmatprep.subr.mxu0 0.0
    %514 = vmatpush1.msra.mxu0 0.0
    %515 = vmatprep.subr.mxu0 0.0
    %516 = vmatpush1.msra.mxu0 0.0
    %517 = vmatprep.subr.mxu0 0.0
    %518 = vmatpush1.msra.mxu0 0.0
    %519 = vmatprep.subr.mxu0 0.0
    %520 = vmatpush1.msra.mxu0 0.0
    %521 = vmatprep.subr.mxu0 0.0
    %522 = vmatpush1.msra.mxu0 0.0
    %523 = vmatprep.subr.mxu0 0.0
    %524 = vmatpush1.msra.mxu0 0.0
    %525 = vmatprep.subr.mxu0 0.0
    %526 = vmatpush1.msra.mxu0 0.0
    %527 = vmatprep.subr.mxu0 0.0
    %528 = vmatpush1.msra.mxu0 0.0
    %529 = vmatprep.subr.mxu0 0.0
    %530 = vmatpush1.msra.mxu0 0.0
    %531 = vmatprep.mubr.f32.mxu0 0.0
    %532 = vmatmul.mubr.f32.gmra.mrb[0].mxu0 %v231
    %v533 = vpop.f32.mrb[0].mxu0
    %v534 = vadd.f32 0.0, %v533
    %v535 = vpop.f32.mrb[0].mxu0
    %536 = vmatprep.mubr.f32.mxu0 0.0
    %537 = vmatmul.mubr.f32.gmra.mrb[0].mxu0 %v234
    %v538 = vpop.f32.mrb[0].mxu0
    %v539 = vadd.f32 0.0, %v538
    %v540 = vpop.f32.mrb[0].mxu0
    %541 = vdwg.mxu0
    %v542 = vmul.f32 %v98, %v534
    %v543 = vmul.f32 %v99, %v539
    %546 = vrot.lane.b32.xlu0 %v106, 112
    %v547 = vpop.permute.xlu0 %546
    %548 = vrot.lane.b32.xlu0 %v107, 112
    %v549 = vpop.permute.xlu0 %548
    %552 = vxpose.xlu0.b32.start [1/16] %v547, 128
    %553 = vxpose.xlu0.b32.cont [2/16] %v549, 128
    %554 = vxpose.xlu0.b32.cont [3/16] 0.0, 128
    %555 = vxpose.xlu0.b32.cont [4/16] 0.0, 128
    %556 = vxpose.xlu0.b32.cont [5/16] 0.0, 128
    %557 = vxpose.xlu0.b32.cont [6/16] 0.0, 128
    %558 = vxpose.xlu0.b32.cont [7/16] 0.0, 128
    %559 = vxpose.xlu0.b32.cont [8/16] 0.0, 128
    %560 = vxpose.xlu0.b32.cont [9/16] 0.0, 128
    %561 = vxpose.xlu0.b32.cont [10/16] 0.0, 128
    %562 = vxpose.xlu0.b32.cont [11/16] 0.0, 128
    %563 = vxpose.xlu0.b32.cont [12/16] 0.0, 128
    %564 = vxpose.xlu0.b32.cont [13/16] 0.0, 128
    %565 = vxpose.xlu0.b32.cont [14/16] 0.0, 128
    %566 = vxpose.xlu0.b32.cont [15/16] 0.0, 128
    %567 = vxpose.xlu0.b32.end [16/16] 0.0, 128
    %v568 = vpop.trf.xlu0
    %v569 = vpop.trf.xlu0
    %v570 = vpop.trf.xlu0
    %v571 = vpop.trf.xlu0
    %v572 = vpop.trf.xlu0
    %v573 = vpop.trf.xlu0
    %v574 = vpop.trf.xlu0
    %v575 = vpop.trf.xlu0
    %v576 = vpop.trf.xlu0
    %v577 = vpop.trf.xlu0
    %v578 = vpop.trf.xlu0
    %v579 = vpop.trf.xlu0
    %v580 = vpop.trf.xlu0
    %v581 = vpop.trf.xlu0
    %v582 = vpop.trf.xlu0
    %v583 = vpop.trf.xlu0
    %v585 = vsel %vm75, %v568, 0
    %v588 = vsel %vm75, %v569, 0
    %590 = vmatprep.subr.mxu0 0.0
    %591 = vmatpush1.msra.mxu0 %v459
    %592 = vmatprep.subr.mxu0 0.0
    %593 = vmatpush1.msra.mxu0 %v464
    %594 = vmatprep.subr.mxu0 0.0
    %595 = vmatpush1.msra.mxu0 0.0
    %596 = vmatprep.subr.mxu0 0.0
    %597 = vmatpush1.msra.mxu0 0.0
    %598 = vmatprep.subr.mxu0 0.0
    %599 = vmatpush1.msra.mxu0 0.0
    %600 = vmatprep.subr.mxu0 0.0
    %601 = vmatpush1.msra.mxu0 0.0
    %602 = vmatprep.subr.mxu0 0.0
    %603 = vmatpush1.msra.mxu0 0.0
    %604 = vmatprep.subr.mxu0 0.0
    %605 = vmatpush1.msra.mxu0 0.0
    %606 = vmatprep.subr.mxu0 0.0
    %607 = vmatpush1.msra.mxu0 0.0
    %608 = vmatprep.subr.mxu0 0.0
    %609 = vmatpush1.msra.mxu0 0.0
    %610 = vmatprep.subr.mxu0 0.0
    %611 = vmatpush1.msra.mxu0 0.0
    %612 = vmatprep.subr.mxu0 0.0
    %613 = vmatpush1.msra.mxu0 0.0
    %614 = vmatprep.subr.mxu0 0.0
    %615 = vmatpush1.msra.mxu0 0.0
    %616 = vmatprep.subr.mxu0 0.0
    %617 = vmatpush1.msra.mxu0 0.0
    %618 = vmatprep.subr.mxu0 0.0
    %619 = vmatpush1.msra.mxu0 0.0
    %620 = vmatprep.subr.mxu0 0.0
    %621 = vmatpush1.msra.mxu0 0.0
    %622 = vmatprep.subr.mxu0 0.0
    %623 = vmatpush1.msra.mxu0 0.0
    %624 = vmatprep.subr.mxu0 0.0
    %625 = vmatpush1.msra.mxu0 0.0
    %626 = vmatprep.subr.mxu0 0.0
    %627 = vmatpush1.msra.mxu0 0.0
    %628 = vmatprep.subr.mxu0 0.0
    %629 = vmatpush1.msra.mxu0 0.0
    %630 = vmatprep.subr.mxu0 0.0
    %631 = vmatpush1.msra.mxu0 0.0
    %632 = vmatprep.subr.mxu0 0.0
    %633 = vmatpush1.msra.mxu0 0.0
    %634 = vmatprep.subr.mxu0 0.0
    %635 = vmatpush1.msra.mxu0 0.0
    %636 = vmatprep.subr.mxu0 0.0
    %637 = vmatpush1.msra.mxu0 0.0
    %638 = vmatprep.subr.mxu0 0.0
    %639 = vmatpush1.msra.mxu0 0.0
    %640 = vmatprep.subr.mxu0 0.0
    %641 = vmatpush1.msra.mxu0 0.0
    %642 = vmatprep.subr.mxu0 0.0
    %643 = vmatpush1.msra.mxu0 0.0
    %644 = vmatprep.subr.mxu0 0.0
    %645 = vmatpush1.msra.mxu0 0.0
    %646 = vmatprep.subr.mxu0 0.0
    %647 = vmatpush1.msra.mxu0 0.0
    %648 = vmatprep.subr.mxu0 0.0
    %649 = vmatpush1.msra.mxu0 0.0
    %650 = vmatprep.subr.mxu0 0.0
    %651 = vmatpush1.msra.mxu0 0.0
    %652 = vmatprep.subr.mxu0 0.0
    %653 = vmatpush1.msra.mxu0 0.0
    %654 = vmatprep.mubr.f32.mxu0 0.0
    %655 = vmatmul.mubr.f32.gmra.mrb[0].mxu0 %v585
    %v656 = vpop.f32.mrb[0].mxu0
    %v657 = vadd.f32 0.0, %v656
    %v658 = vpop.f32.mrb[0].mxu0
    %659 = vmatprep.mubr.f32.mxu0 0.0
    %660 = vmatmul.mubr.f32.gmra.mrb[0].mxu0 %v588
    %v661 = vpop.f32.mrb[0].mxu0
    %v662 = vadd.f32 0.0, %v661
    %v663 = vpop.f32.mrb[0].mxu0
    %664 = vdwg.mxu0
    %v665 = vmul.f32 %v102, %v657
    %v666 = vmul.f32 %v103, %v662
    %668 = vrot.lane.b32.xlu0 %v195, 48
    %v669 = vpop.permute.xlu0 %668
    %v670 = vsel %vm75, %v669, 0
    %v673 = vsel %vm75, %v665, 0
    %v676 = vsel %vm75, %v666, 0
    %678 = vmatprep.subr.mxu0 0.0
    %679 = vmatpush1.xpose.msra.mxu0 %v673
    %680 = vmatprep.subr.mxu0 0.0
    %681 = vmatpush1.xpose.msra.mxu0 %v676
    %682 = vmatprep.subr.mxu0 0.0
    %683 = vmatpush1.xpose.msra.mxu0 0.0
    %684 = vmatprep.subr.mxu0 0.0
    %685 = vmatpush1.xpose.msra.mxu0 0.0
    %686 = vmatprep.subr.mxu0 0.0
    %687 = vmatpush1.xpose.msra.mxu0 0.0
    %688 = vmatprep.subr.mxu0 0.0
    %689 = vmatpush1.xpose.msra.mxu0 0.0
    %690 = vmatprep.subr.mxu0 0.0
    %691 = vmatpush1.xpose.msra.mxu0 0.0
    %692 = vmatprep.subr.mxu0 0.0
    %693 = vmatpush1.xpose.msra.mxu0 0.0
    %694 = vmatprep.subr.mxu0 0.0
    %695 = vmatpush1.xpose.msra.mxu0 0.0
    %696 = vmatprep.subr.mxu0 0.0
    %697 = vmatpush1.xpose.msra.mxu0 0.0
    %698 = vmatprep.subr.mxu0 0.0
    %699 = vmatpush1.xpose.msra.mxu0 0.0
    %700 = vmatprep.subr.mxu0 0.0
    %701 = vmatpush1.xpose.msra.mxu0 0.0
    %702 = vmatprep.subr.mxu0 0.0
    %703 = vmatpush1.xpose.msra.mxu0 0.0
    %704 = vmatprep.subr.mxu0 0.0
    %705 = vmatpush1.xpose.msra.mxu0 0.0
    %706 = vmatprep.subr.mxu0 0.0
    %707 = vmatpush1.xpose.msra.mxu0 0.0
    %708 = vmatprep.subr.mxu0 0.0
    %709 = vmatpush1.xpose.msra.mxu0 0.0
    %710 = vmatprep.subr.mxu0 0.0
    %711 = vmatpush1.xpose.msra.mxu0 0.0
    %712 = vmatprep.subr.mxu0 0.0
    %713 = vmatpush1.xpose.msra.mxu0 0.0
    %714 = vmatprep.subr.mxu0 0.0
    %715 = vmatpush1.xpose.msra.mxu0 0.0
    %716 = vmatprep.subr.mxu0 0.0
    %717 = vmatpush1.xpose.msra.mxu0 0.0
    %718 = vmatprep.subr.mxu0 0.0
    %719 = vmatpush1.xpose.msra.mxu0 0.0
    %720 = vmatprep.subr.mxu0 0.0
    %721 = vmatpush1.xpose.msra.mxu0 0.0
    %722 = vmatprep.subr.mxu0 0.0
    %723 = vmatpush1.xpose.msra.mxu0 0.0
    %724 = vmatprep.subr.mxu0 0.0
    %725 = vmatpush1.xpose.msra.mxu0 0.0
    %726 = vmatprep.subr.mxu0 0.0
    %727 = vmatpush1.xpose.msra.mxu0 0.0
    %728 = vmatprep.subr.mxu0 0.0
    %729 = vmatpush1.xpose.msra.mxu0 0.0
    %730 = vmatprep.subr.mxu0 0.0
    %731 = vmatpush1.xpose.msra.mxu0 0.0
    %732 = vmatprep.subr.mxu0 0.0
    %733 = vmatpush1.xpose.msra.mxu0 0.0
    %734 = vmatprep.subr.mxu0 0.0
    %735 = vmatpush1.xpose.msra.mxu0 0.0
    %736 = vmatprep.subr.mxu0 0.0
    %737 = vmatpush1.xpose.msra.mxu0 0.0
    %738 = vmatprep.subr.mxu0 0.0
    %739 = vmatpush1.xpose.msra.mxu0 0.0
    %740 = vmatprep.subr.mxu0 0.0
    %741 = vmatpush1.xpose.msra.mxu0 0.0
    %742 = vmatprep.mubr.f32.mxu0 0.0
    %743 = vmatmul.mubr.f32.gmra.mrb[0].mxu0 %v670
    %v744 = vpop.f32.mrb[0].mxu0
    %v745 = vadd.f32 0.0, %v744
    %v746 = vpop.f32.mrb[0].mxu0
    %747 = vdwg.mxu0
    %748 = vrot.lane.b32.xlu0 %v195, 64
    %v749 = vpop.permute.xlu0 %748
    %v750 = vsel %vm75, %v749, 0
    %v753 = vsel %vm75, %v542, 0
    %v756 = vsel %vm75, %v543, 0
    %758 = vmatprep.subr.mxu0 0.0
    %759 = vmatpush1.xpose.msra.mxu0 %v753
    %760 = vmatprep.subr.mxu0 0.0
    %761 = vmatpush1.xpose.msra.mxu0 %v756
    %762 = vmatprep.subr.mxu0 0.0
    %763 = vmatpush1.xpose.msra.mxu0 0.0
    %764 = vmatprep.subr.mxu0 0.0
    %765 = vmatpush1.xpose.msra.mxu0 0.0
    %766 = vmatprep.subr.mxu0 0.0
    %767 = vmatpush1.xpose.msra.mxu0 0.0
    %768 = vmatprep.subr.mxu0 0.0
    %769 = vmatpush1.xpose.msra.mxu0 0.0
    %770 = vmatprep.subr.mxu0 0.0
    %771 = vmatpush1.xpose.msra.mxu0 0.0
    %772 = vmatprep.subr.mxu0 0.0
    %773 = vmatpush1.xpose.msra.mxu0 0.0
    %774 = vmatprep.subr.mxu0 0.0
    %775 = vmatpush1.xpose.msra.mxu0 0.0
    %776 = vmatprep.subr.mxu0 0.0
    %777 = vmatpush1.xpose.msra.mxu0 0.0
    %778 = vmatprep.subr.mxu0 0.0
    %779 = vmatpush1.xpose.msra.mxu0 0.0
    %780 = vmatprep.subr.mxu0 0.0
    %781 = vmatpush1.xpose.msra.mxu0 0.0
    %782 = vmatprep.subr.mxu0 0.0
    %783 = vmatpush1.xpose.msra.mxu0 0.0
    %784 = vmatprep.subr.mxu0 0.0
    %785 = vmatpush1.xpose.msra.mxu0 0.0
    %786 = vmatprep.subr.mxu0 0.0
    %787 = vmatpush1.xpose.msra.mxu0 0.0
    %788 = vmatprep.subr.mxu0 0.0
    %789 = vmatpush1.xpose.msra.mxu0 0.0
    %790 = vmatprep.subr.mxu0 0.0
    %791 = vmatpush1.xpose.msra.mxu0 0.0
    %792 = vmatprep.subr.mxu0 0.0
    %793 = vmatpush1.xpose.msra.mxu0 0.0
    %794 = vmatprep.subr.mxu0 0.0
    %795 = vmatpush1.xpose.msra.mxu0 0.0
    %796 = vmatprep.subr.mxu0 0.0
    %797 = vmatpush1.xpose.msra.mxu0 0.0
    %798 = vmatprep.subr.mxu0 0.0
    %799 = vmatpush1.xpose.msra.mxu0 0.0
    %800 = vmatprep.subr.mxu0 0.0
    %801 = vmatpush1.xpose.msra.mxu0 0.0
    %802 = vmatprep.subr.mxu0 0.0
    %803 = vmatpush1.xpose.msra.mxu0 0.0
    %804 = vmatprep.subr.mxu0 0.0
    %805 = vmatpush1.xpose.msra.mxu0 0.0
    %806 = vmatprep.subr.mxu0 0.0
    %807 = vmatpush1.xpose.msra.mxu0 0.0
    %808 = vmatprep.subr.mxu0 0.0
    %809 = vmatpush1.xpose.msra.mxu0 0.0
    %810 = vmatprep.subr.mxu0 0.0
    %811 = vmatpush1.xpose.msra.mxu0 0.0
    %812 = vmatprep.subr.mxu0 0.0
    %813 = vmatpush1.xpose.msra.mxu0 0.0
    %814 = vmatprep.subr.mxu0 0.0
    %815 = vmatpush1.xpose.msra.mxu0 0.0
    %816 = vmatprep.subr.mxu0 0.0
    %817 = vmatpush1.xpose.msra.mxu0 0.0
    %818 = vmatprep.subr.mxu0 0.0
    %819 = vmatpush1.xpose.msra.mxu0 0.0
    %820 = vmatprep.subr.mxu0 0.0
    %821 = vmatpush1.xpose.msra.mxu0 0.0
    %822 = vmatprep.mubr.f32.mxu0 0.0
    %823 = vmatmul.mubr.f32.gmra.mrb[0].mxu0 %v750
    %v824 = vpop.f32.mrb[0].mxu0
    %v825 = vadd.f32 %v745, %v824
    %v826 = vpop.f32.mrb[0].mxu0
    %827 = vdwg.mxu0
    %vm828 = vcmask 125952
    %829 = vst.msk [vmem:[#allocation8] sm:$0xf] %vm828, %v825
    // Predicated region
    $region26: #{tpu_custom_call.1} parent=1 // pred_check
      _
    $region27: #{tpu_custom_call.1} parent=1 // pred_check_branch
      %831 = sbr.rel (0) target = $region29
    $region28: #{tpu_custom_call.1} parent=1 // pred_region
      %s833 = ssub.s32 64, 64
      %834 = vsyncadd [#allocation4], %s833
      %s836 = sshll.u32 [#allocation8], 4
      %s837 = int_to_ptr.vmem [resolvable:$true] %s836
      %839 = dma.vmem_to_hbm [thread:$0]  %s837, 64, %s3, [#allocation4]
    $region29: #{tpu_custom_call.1} parent=1 // pred_fallthru
      _
    // Predicated region
    $region30: #{tpu_custom_call.1} parent=1 // pred_check
      _
    $region31: #{tpu_custom_call.1} parent=1 // pred_check_branch
      %841 = sbr.rel (0) target = $region33
    $region32: #{tpu_custom_call.1} parent=1 // pred_region
      %842 = dma.done [#allocation4], 64
    $region33: #{tpu_custom_call.1} parent=1 // pred_fallthru
      _
    %843 = vsyncpa [#allocation3], 1
    %844 = vsyncpa [#allocation6], 1
    %845 = vsyncpa [#allocation4], 1

</llo_original>
